<compile_context>
chip_gen: v5e
topology: v5e:2x2
jax: 0.10.0
libtpu: 0.0.40
codegen_flags: <defaults>
</compile_context>

<pallas_src>
from functools import partial

import jax
import jax.numpy as jnp
from jax.experimental import pallas as pl
from jax.experimental.pallas import tpu as pltpu


# ----------------------------- helpers --------------------------------------

def _round_up(x: int, m: int) -> int:
    return ((x + m - 1) // m) * m


# ----------------------------- kernel ---------------------------------------

def _make_fused_dbn_kernel(num_layers: int):
    """Kernel body: refs = (x, w1, b1, w2, b2, ..., wL, bL, out).

    Whole network evaluated in one body; intermediate activations never leave
    vregs/VMEM.  Dots accumulate in f32; bias-add / ReLU epilogue in f32.
    """
    def kernel(*refs):
        x_ref = refs[0]
        out_ref = refs[-1]
        h = x_ref[...]                                   # (tm, K0) f32
        for i in range(num_layers):
            w = refs[1 + 2 * i][...]                     # (K_i, N_i) f32/bf16
            b = refs[2 + 2 * i][...]                     # (1,   N_i) f32
            h = jnp.dot(h.astype(w.dtype), w,
                        preferred_element_type=jnp.float32) + b
            if i < num_layers - 1:                       # no ReLU on the head
                h = jnp.maximum(h, 0.0)
        out_ref[...] = h.astype(out_ref.dtype)
    return kernel


# ----------------------------- params ---------------------------------------

def init_dbn_params(key, input_dim, hidden_dims, num_classes):
    """Deterministic init mimicking nn.Linear (uniform +-1/sqrt(fan_in)).
    Weights are stored already transposed: (fan_in, fan_out)."""
    params = []
    dims = [input_dim] + list(hidden_dims) + [num_classes]
    for i in range(len(dims) - 1):
        fan_in, fan_out = dims[i], dims[i + 1]
        key, kw, kb = jax.random.split(key, 3)
        bound = 1.0 / jnp.sqrt(jnp.float32(fan_in))
        w_t = jax.random.uniform(kw, (fan_in, fan_out), jnp.float32,
                                 minval=-bound, maxval=bound)
        b = jax.random.uniform(kb, (fan_out,), jnp.float32,
                               minval=-bound, maxval=bound)
        params.append((w_t, b))
    return params


def prepare_dbn_params(params, weight_dtype=jnp.float32):
    """One-time layout prep: weights kept at exact (fan_in, fan_out) shape in
    `weight_dtype` (f32 exact, bf16 for v6e/v7x MXU rate / half DMA bytes);
    biases stored as (1, fan_out) f32 so the epilogue stays in f32."""
    prepared = []
    for (w_t, b) in params:
        prepared.append((w_t.astype(weight_dtype),
                         b.astype(jnp.float32).reshape(1, -1)))
    return prepared


# ----------------------------- forward --------------------------------------

@partial(jax.jit, static_argnames=("max_batch_tile",))
def dbn_forward(prepared_params, x, max_batch_tile=512):
    """Fused DBN forward: one pallas_call for the whole network."""
    B = x.shape[0]
    h = x.reshape(B, -1).astype(jnp.float32)             # x.view(B, -1)
    K = h.shape[1]
    num_out = prepared_params[-1][0].shape[1]

    # Batch tile: biggest-that-fits up to 512 (multiple of 8).  If B fits in
    # one tile, use tm == B (block dim == array dim is always legal, even when
    # B isn't a multiple of 8).  For larger B cap the tile near B/2 so the
    # "parallel" batch axis has >= 2 tiles and v7x's 2 TensorCores both work.
    tm = min(max_batch_tile, B)
    if B > 256:
        tm = min(tm, _round_up(pl.cdiv(B, 2), 8))
    grid = (pl.cdiv(B, tm),)

    n_layers = len(prepared_params)
    kernel = _make_fused_dbn_kernel(n_layers)

    # Grid-invariant weights/biases: DMA'd once, single-buffered (no point
    # double-buffering something whose index_map never changes).
    resident = pl.Buffered(buffer_count=1)

    in_specs = [pl.BlockSpec((tm, K), lambda i: (i, 0))]
    flat_inputs = [h]
    for (w, b) in prepared_params:
        kd, nd = w.shape
        in_specs.append(pl.BlockSpec((kd, nd), lambda i: (0, 0),
                                     pipeline_mode=resident))
        in_specs.append(pl.BlockSpec((1, nd), lambda i: (0, 0),
                                     pipeline_mode=resident))
        flat_inputs += [w, b]

    out = pl.pallas_call(
        kernel,
        out_shape=jax.ShapeDtypeStruct((B, num_out), jnp.float32),
        grid=grid,
        in_specs=in_specs,
        # Unpadded narrow head output: masked store, but ~42x fewer HBM bytes
        # than a 128-padded head + slice pass.
        out_specs=pl.BlockSpec((tm, num_out), lambda i: (i, 0)),
        compiler_params=pltpu.CompilerParams(
            dimension_semantics=("parallel",),
            vmem_limit_bytes=32 * 1024 * 1024),
    )(*flat_inputs)
    return out

# TODO(synk): for much larger hidden_dims (resident weights approaching the
# v7x 64 MiB VMEM budget), add a K/N-tiled variant with an f32 accumulator
# scratch and an "arbitrary" reduction axis instead of fully-resident weights;
# biases could also be packed into one stacked (L, N_max) input at that point.


# ----------------------------- main ------------------------------------------

if __name__ == "__main__":
    input_dim = 100
    hidden_dims = [128, 64]
    num_classes = 3
    batch = 8

    key = jax.random.PRNGKey(0)
    key_x, key_p = jax.random.split(key)

    x = jax.random.normal(key_x, (batch, input_dim), dtype=jnp.float32)
    params = init_dbn_params(key_p, input_dim, hidden_dims, num_classes)

    # Pure-JAX reference of the same forward.
    ref = x.reshape(batch, -1).astype(jnp.float32)
    for (w_t, b) in params[:-1]:
        ref = jnp.maximum(ref @ w_t + b, 0.0)
    ref = ref @ params[-1][0] + params[-1][1]

    # f32 weights: exact match.
    p_f32 = prepare_dbn_params(params, jnp.float32)
    out_f32 = jax.block_until_ready(dbn_forward(p_f32, x))
    assert out_f32.shape == (batch, num_classes)
    assert jnp.allclose(out_f32, ref, atol=1e-5, rtol=1e-5)

    # bf16 weights (v6e/v7x MXU-friendly path): looser tolerance.
    p_bf16 = prepare_dbn_params(params, jnp.bfloat16)
    out_bf16 = jax.block_until_ready(dbn_forward(p_bf16, x))
    assert out_bf16.shape == (batch, num_classes)
    assert jnp.allclose(out_bf16, ref, atol=5e-2, rtol=5e-2)

    print("KERNEL_OK")
</pallas_src>

<mosaic_0001>
module attributes {stable_mosaic.version = 11 : i64} {
  func.func @kernel(%arg0: i32, %arg1: memref<8x100xf32, #tpu.memory_space<vmem>>, %arg2: memref<100x128xf32, #tpu.memory_space<vmem>>, %arg3: memref<1x128xf32, #tpu.memory_space<vmem>>, %arg4: memref<128x64xf32, #tpu.memory_space<vmem>>, %arg5: memref<1x64xf32, #tpu.memory_space<vmem>>, %arg6: memref<64x3xf32, #tpu.memory_space<vmem>>, %arg7: memref<1x3xf32, #tpu.memory_space<vmem>>, %arg8: memref<8x3xf32, #tpu.memory_space<vmem>>) attributes {dimension_semantics = [#tpu.dimension_semantics<parallel>], iteration_bounds = array<i64: 1>, scalar_prefetch = 0 : i64, scratch_operands = 0 : i64, tpu.core_type = #tpu.core_type<tc>, window_params = [{transform_indices = @transform_0, window_bounds = array<i64: 8, 100>}, {pipeline_mode = #tpu.pipeline_mode<synchronous>, transform_indices = @transform_1, window_bounds = array<i64: 100, 128>}, {pipeline_mode = #tpu.pipeline_mode<synchronous>, transform_indices = @transform_2, window_bounds = array<i64: 1, 128>}, {pipeline_mode = #tpu.pipeline_mode<synchronous>, transform_indices = @transform_3, window_bounds = array<i64: 128, 64>}, {pipeline_mode = #tpu.pipeline_mode<synchronous>, transform_indices = @transform_4, window_bounds = array<i64: 1, 64>}, {pipeline_mode = #tpu.pipeline_mode<synchronous>, transform_indices = @transform_5, window_bounds = array<i64: 64, 3>}, {pipeline_mode = #tpu.pipeline_mode<synchronous>, transform_indices = @transform_6, window_bounds = array<i64: 1, 3>}, {transform_indices = @transform_7, window_bounds = array<i64: 8, 3>}]} {
    %c0 = arith.constant 0 : index
    %c0_0 = arith.constant 0 : index
    %0 = vector.load %arg1[%c0, %c0_0] : memref<8x100xf32, #tpu.memory_space<vmem>>, vector<8x100xf32>
    %c0_1 = arith.constant 0 : index
    %c0_2 = arith.constant 0 : index
    %1 = vector.load %arg2[%c0_1, %c0_2] : memref<100x128xf32, #tpu.memory_space<vmem>>, vector<100x128xf32>
    %c0_3 = arith.constant 0 : index
    %c0_4 = arith.constant 0 : index
    %2 = vector.load %arg3[%c0_3, %c0_4] : memref<1x128xf32, #tpu.memory_space<vmem>>, vector<1x128xf32>
    %cst = arith.constant dense<0.000000e+00> : vector<8x128xf32>
    %3 = tpu.matmul %0, %1, %cst {dimension_numbers = #tpu.dot_dimension_numbers<[1], [0], [0], [1], [0, 0, 1, 1], [], []>} : vector<8x100xf32>, vector<100x128xf32>, vector<8x128xf32> -> vector<8x128xf32>
    %4 = vector.broadcast %2 : vector<1x128xf32> to vector<8x128xf32>
    %5 = arith.addf %3, %4 : vector<8x128xf32>
    %cst_5 = arith.constant 0.000000e+00 : f32
    %6 = vector.broadcast %cst_5 : f32 to vector<8x128xf32>
    %7 = arith.maximumf %5, %6 : vector<8x128xf32>
    %c0_6 = arith.constant 0 : index
    %c0_7 = arith.constant 0 : index
    %8 = vector.load %arg4[%c0_6, %c0_7] : memref<128x64xf32, #tpu.memory_space<vmem>>, vector<128x64xf32>
    %c0_8 = arith.constant 0 : index
    %c0_9 = arith.constant 0 : index
    %9 = vector.load %arg5[%c0_8, %c0_9] : memref<1x64xf32, #tpu.memory_space<vmem>>, vector<1x64xf32>
    %cst_10 = arith.constant dense<0.000000e+00> : vector<8x64xf32>
    %10 = tpu.matmul %7, %8, %cst_10 {dimension_numbers = #tpu.dot_dimension_numbers<[1], [0], [0], [1], [0, 0, 1, 1], [], []>} : vector<8x128xf32>, vector<128x64xf32>, vector<8x64xf32> -> vector<8x64xf32>
    %11 = vector.broadcast %9 : vector<1x64xf32> to vector<8x64xf32>
    %12 = arith.addf %10, %11 : vector<8x64xf32>
    %cst_11 = arith.constant 0.000000e+00 : f32
    %13 = vector.broadcast %cst_11 : f32 to vector<8x64xf32>
    %14 = arith.maximumf %12, %13 : vector<8x64xf32>
    %c0_12 = arith.constant 0 : index
    %c0_13 = arith.constant 0 : index
    %15 = vector.load %arg6[%c0_12, %c0_13] : memref<64x3xf32, #tpu.memory_space<vmem>>, vector<64x3xf32>
    %c0_14 = arith.constant 0 : index
    %c0_15 = arith.constant 0 : index
    %16 = vector.load %arg7[%c0_14, %c0_15] : memref<1x3xf32, #tpu.memory_space<vmem>>, vector<1x3xf32>
    %cst_16 = arith.constant dense<0.000000e+00> : vector<8x3xf32>
    %17 = tpu.matmul %14, %15, %cst_16 {dimension_numbers = #tpu.dot_dimension_numbers<[1], [0], [0], [1], [0, 0, 1, 1], [], []>} : vector<8x64xf32>, vector<64x3xf32>, vector<8x3xf32> -> vector<8x3xf32>
    %18 = vector.broadcast %16 : vector<1x3xf32> to vector<8x3xf32>
    %19 = arith.addf %17, %18 : vector<8x3xf32>
    %c0_17 = arith.constant 0 : index
    %c0_18 = arith.constant 0 : index
    %20 = vector.load %arg8[%c0_17, %c0_18] : memref<8x3xf32, #tpu.memory_space<vmem>>, vector<8x3xf32>
    tpu.vector_store %arg8[%c0_17, %c0_18], %19 {strides = array<i32>} : memref<8x3xf32, #tpu.memory_space<vmem>>, vector<8x3xf32>,
    return
  }
  func.func @transform_0(%arg0: i32) -> (i32, i32) {
    %c0_i32 = arith.constant 0 : i32
    %c0_i32_0 = arith.constant 0 : i32
    return %arg0, %c0_i32 : i32, i32
  }
  func.func @transform_1(%arg0: i32) -> (i32, i32) {
    %c0_i32 = arith.constant 0 : i32
    %c0_i32_0 = arith.constant 0 : i32
    %c0_i32_1 = arith.constant 0 : i32
    return %c0_i32, %c0_i32_0 : i32, i32
  }
  func.func @transform_2(%arg0: i32) -> (i32, i32) {
    %c0_i32 = arith.constant 0 : i32
    %c0_i32_0 = arith.constant 0 : i32
    %c0_i32_1 = arith.constant 0 : i32
    return %c0_i32, %c0_i32_0 : i32, i32
  }
  func.func @transform_3(%arg0: i32) -> (i32, i32) {
    %c0_i32 = arith.constant 0 : i32
    %c0_i32_0 = arith.constant 0 : i32
    %c0_i32_1 = arith.constant 0 : i32
    return %c0_i32, %c0_i32_0 : i32, i32
  }
  func.func @transform_4(%arg0: i32) -> (i32, i32) {
    %c0_i32 = arith.constant 0 : i32
    %c0_i32_0 = arith.constant 0 : i32
    %c0_i32_1 = arith.constant 0 : i32
    return %c0_i32, %c0_i32_0 : i32, i32
  }
  func.func @transform_5(%arg0: i32) -> (i32, i32) {
    %c0_i32 = arith.constant 0 : i32
    %c0_i32_0 = arith.constant 0 : i32
    %c0_i32_1 = arith.constant 0 : i32
    return %c0_i32, %c0_i32_0 : i32, i32
  }
  func.func @transform_6(%arg0: i32) -> (i32, i32) {
    %c0_i32 = arith.constant 0 : i32
    %c0_i32_0 = arith.constant 0 : i32
    %c0_i32_1 = arith.constant 0 : i32
    return %c0_i32, %c0_i32_0 : i32, i32
  }
  func.func @transform_7(%arg0: i32) -> (i32, i32) {
    %c0_i32 = arith.constant 0 : i32
    %c0_i32_0 = arith.constant 0 : i32
    return %arg0, %c0_i32 : i32, i32
  }
}

</mosaic_0001>

<llo_original>
// kernel: dbn_forward.1
$region0: #{dbn_forward.1}
  #allocation0 [shape = 'u32[]', space=smem, size = 0x4, offset = 0x4, fixed_abs, tag = 'smem constant byte address 0x4 - core index']
  #allocation1 [shape = 'u32[72,128]{1,0:T(1,128)}', space=vmem, size = 0x9000, scoped, tag = 'internal scratch']
  %s0 = inlined_call_operand.vmem [shape: f32[8,100], index: 0, kind: input, shape index: {}]
  %s1 = inlined_call_operand.vmem [shape: f32[100,128], index: 1, kind: input, shape index: {}]
  %s2 = inlined_call_operand.vmem [shape: f32[1,128], index: 2, kind: input, shape index: {}]
  %s3 = inlined_call_operand.vmem [shape: f32[128,64], index: 3, kind: input, shape index: {}]
  %s4 = inlined_call_operand.vmem [shape: f32[1,64], index: 4, kind: input, shape index: {}]
  %s5 = inlined_call_operand.vmem [shape: f32[64,3], index: 5, kind: input, shape index: {}]
  %s6 = inlined_call_operand.vmem [shape: f32[1,3], index: 6, kind: input, shape index: {}]
  %s7 = inlined_call_operand.vmem [shape: f32[8,3], index: 7, kind: output, shape index: {}]
  %s8 = sld [smem:[#allocation0]]
  $region38: #{dbn_forward.1} parent=0
    _
  %s10 = ssub.s32 1, %s8
  %s11 = scalar_select 0, %s10, %s8
  // Predicated region
  $region2: #{dbn_forward.1} parent=0 // pred_check
    _
  $region3: #{dbn_forward.1} parent=0 // pred_check_branch
    %13 = sbr.rel (0) target = $region5
  $region4: #{dbn_forward.1} parent=0 // pred_region
    _
  $region5: #{dbn_forward.1} parent=0 // pred_fallthru
    _
  // Predicated region
  $region6: #{dbn_forward.1} parent=0 // pred_check
    _
  $region7: #{dbn_forward.1} parent=0 // pred_check_branch
    %15 = sbr.rel (0) target = $region9
  $region8: #{dbn_forward.1} parent=0 // pred_region
    _
  $region9: #{dbn_forward.1} parent=0 // pred_fallthru
    _
  // Predicated region
  $region10: #{dbn_forward.1} parent=0 // pred_check
    _
  $region11: #{dbn_forward.1} parent=0 // pred_check_branch
    %17 = sbr.rel (0) target = $region13
  $region12: #{dbn_forward.1} parent=0 // pred_region
    _
  $region13: #{dbn_forward.1} parent=0 // pred_fallthru
    _
  // Predicated region
  $region14: #{dbn_forward.1} parent=0 // pred_check
    _
  $region15: #{dbn_forward.1} parent=0 // pred_check_branch
    %19 = sbr.rel (0) target = $region17
  $region16: #{dbn_forward.1} parent=0 // pred_region
    _
  $region17: #{dbn_forward.1} parent=0 // pred_fallthru
    _
  // Predicated region
  $region18: #{dbn_forward.1} parent=0 // pred_check
    _
  $region19: #{dbn_forward.1} parent=0 // pred_check_branch
    %21 = sbr.rel (0) target = $region21
  $region20: #{dbn_forward.1} parent=0 // pred_region
    _
  $region21: #{dbn_forward.1} parent=0 // pred_fallthru
    _
  // Predicated region
  $region22: #{dbn_forward.1} parent=0 // pred_check
    _
  $region23: #{dbn_forward.1} parent=0 // pred_check_branch
    %23 = sbr.rel (0) target = $region25
  $region24: #{dbn_forward.1} parent=0 // pred_region
    _
  $region25: #{dbn_forward.1} parent=0 // pred_fallthru
    _
  // Predicated region
  $region26: #{dbn_forward.1} parent=0 // pred_check
    _
  $region27: #{dbn_forward.1} parent=0 // pred_check_branch
    %25 = sbr.rel (0) target = $region29
  $region28: #{dbn_forward.1} parent=0 // pred_region
    _
  $region29: #{dbn_forward.1} parent=0 // pred_fallthru
    _
  %v26 = vld [vmem:[%s0] sm:$0xff]
  %v27 = vld [vmem:[%s1] sm:$0xff]
  %v28 = vld [vmem:[%s1 + $0x8] sm:$0xff]
  %v29 = vld [vmem:[%s1 + $0x10] sm:$0xff]
  %v30 = vld [vmem:[%s1 + $0x18] sm:$0xff]
  %v31 = vld [vmem:[%s1 + $0x20] sm:$0xff]
  %v32 = vld [vmem:[%s1 + $0x28] sm:$0xff]
  %v33 = vld [vmem:[%s1 + $0x30] sm:$0xff]
  %v34 = vld [vmem:[%s1 + $0x38] sm:$0xff]
  %v35 = vld [vmem:[%s1 + $0x40] sm:$0xff]
  %v36 = vld [vmem:[%s1 + $0x48] sm:$0xff]
  %v37 = vld [vmem:[%s1 + $0x50] sm:$0xff]
  %v38 = vld [vmem:[%s1 + $0x58] sm:$0xff]
  %v39 = vld [vmem:[%s1 + $0x60] sm:$0xf]
  %v40 = vld [vmem:[%s2] sm:$0x1]
  %v42 = vperm.slane %v40, 0
  %vm44 = vcmask 818176
  %v46 = vsel %vm44, %v26, 0
  %vm48 = vcmask 1043456
  %v50 = vsel %vm48, %v39, 0
  %52 = vmatpush.msra.mxu0 0.0
  %53 = vmatpush.msra.mxu0 0.0
  %54 = vmatpush.msra.mxu0 0.0
  %55 = vmatpush.msra.mxu0 %v50
  %56 = vmatpush.msra.mxu0 %v38
  %57 = vmatpush.msra.mxu0 %v37
  %58 = vmatpush.msra.mxu0 %v36
  %59 = vmatpush.msra.mxu0 %v35
  %60 = vmatpush.msra.mxu0 %v34
  %61 = vmatpush.msra.mxu0 %v33
  %62 = vmatpush.msra.mxu0 %v32
  %63 = vmatpush.msra.mxu0 %v31
  %64 = vmatpush.msra.mxu0 %v30
  %65 = vmatpush.msra.mxu0 %v29
  %66 = vmatpush.msra.mxu0 %v28
  %67 = vmatpush.msra.mxu0 %v27
  %68 = vmatmul.f32.gmra.mxu0 %v46
  %v69 = vpop.f32.mrf.mxu0
  %v70 = vadd.f32 %v42, %v69
  %71 = vdwg.mxu0
  %v72 = vmax.f32 %v70, 0.0
  %v73 = vld [vmem:[%s3] sm:$0xff]
  %v74 = vld [vmem:[%s3 + $0x8] sm:$0xff]
  %v75 = vld [vmem:[%s3 + $0x10] sm:$0xff]
  %v76 = vld [vmem:[%s3 + $0x18] sm:$0xff]
  %v77 = vld [vmem:[%s3 + $0x20] sm:$0xff]
  %v78 = vld [vmem:[%s3 + $0x28] sm:$0xff]
  %v79 = vld [vmem:[%s3 + $0x30] sm:$0xff]
  %v80 = vld [vmem:[%s3 + $0x38] sm:$0xff]
  %v81 = vld [vmem:[%s3 + $0x40] sm:$0xff]
  %v82 = vld [vmem:[%s3 + $0x48] sm:$0xff]
  %v83 = vld [vmem:[%s3 + $0x50] sm:$0xff]
  %v84 = vld [vmem:[%s3 + $0x58] sm:$0xff]
  %v85 = vld [vmem:[%s3 + $0x60] sm:$0xff]
  %v86 = vld [vmem:[%s3 + $0x68] sm:$0xff]
  %v87 = vld [vmem:[%s3 + $0x70] sm:$0xff]
  %v88 = vld [vmem:[%s3 + $0x78] sm:$0xff]
  %v89 = vld [vmem:[%s4] sm:$0x1]
  %v91 = vperm.slane %v89, 0
  %93 = vmatpush.msra.mxu0 %v88
  %94 = vmatpush.msra.mxu0 %v87
  %95 = vmatpush.msra.mxu0 %v86
  %96 = vmatpush.msra.mxu0 %v85
  %97 = vmatpush.msra.mxu0 %v84
  %98 = vmatpush.msra.mxu0 %v83
  %99 = vmatpush.msra.mxu0 %v82
  %100 = vmatpush.msra.mxu0 %v81
  %101 = vmatpush.msra.mxu0 %v80
  %102 = vmatpush.msra.mxu0 %v79
  %103 = vmatpush.msra.mxu0 %v78
  %104 = vmatpush.msra.mxu0 %v77
  %105 = vmatpush.msra.mxu0 %v76
  %106 = vmatpush.msra.mxu0 %v75
  %107 = vmatpush.msra.mxu0 %v74
  %108 = vmatpush.msra.mxu0 %v73
  %109 = vmatmul.f32.gmra.mxu0 %v72
  %v110 = vpop.f32.mrf.mxu0
  %v111 = vadd.f32 %v91, %v110
  %112 = vdwg.mxu0
  %v113 = vmax.f32 %v111, 0.0
  %v114 = vld [vmem:[%s5] sm:$0xff]
  %v115 = vld [vmem:[%s5 + $0x8] sm:$0xff]
  %v116 = vld [vmem:[%s5 + $0x10] sm:$0xff]
  %v117 = vld [vmem:[%s5 + $0x18] sm:$0xff]
  %v118 = vld [vmem:[%s5 + $0x20] sm:$0xff]
  %v119 = vld [vmem:[%s5 + $0x28] sm:$0xff]
  %v120 = vld [vmem:[%s5 + $0x30] sm:$0xff]
  %v121 = vld [vmem:[%s5 + $0x38] sm:$0xff]
  %v122 = vld [vmem:[%s6] sm:$0x1]
  %v124 = vperm.slane %v122, 0
  %vm126 = vcmask 523264
  %v128 = vsel %vm126, %v113, 0
  %130 = vmatpush.msra.mxu0 0.0
  %131 = vmatpush.msra.mxu0 0.0
  %132 = vmatpush.msra.mxu0 0.0
  %133 = vmatpush.msra.mxu0 0.0
  %134 = vmatpush.msra.mxu0 0.0
  %135 = vmatpush.msra.mxu0 0.0
  %136 = vmatpush.msra.mxu0 0.0
  %137 = vmatpush.msra.mxu0 0.0
  %138 = vmatpush.msra.mxu0 %v121
  %139 = vmatpush.msra.mxu0 %v120
  %140 = vmatpush.msra.mxu0 %v119
  %141 = vmatpush.msra.mxu0 %v118
  %142 = vmatpush.msra.mxu0 %v117
  %143 = vmatpush.msra.mxu0 %v116
  %144 = vmatpush.msra.mxu0 %v115
  %145 = vmatpush.msra.mxu0 %v114
  %146 = vmatmul.f32.gmra.mxu0 %v128
  %v147 = vpop.f32.mrf.mxu0
  %v148 = vadd.f32 %v124, %v147
  %149 = vdwg.mxu0
  %vm150 = vcmask 23552
  %151 = vst.msk [vmem:[%s7] sm:$0xff] %vm150, %v148
  // Predicated region
  $region30: #{dbn_forward.1} parent=0 // pred_check
    _
  $region31: #{dbn_forward.1} parent=0 // pred_check_branch
    %153 = sbr.rel (0) target = $region33
  $region32: #{dbn_forward.1} parent=0 // pred_region
    _
  $region33: #{dbn_forward.1} parent=0 // pred_fallthru
    _
  // Predicated region
  $region34: #{dbn_forward.1} parent=0 // pred_check
    _
  $region35: #{dbn_forward.1} parent=0 // pred_check_branch
    %155 = sbr.rel (0) target = $region37
  $region36: #{dbn_forward.1} parent=0 // pred_region
    _
  $region37: #{dbn_forward.1} parent=0 // pred_fallthru
    _

</llo_original>
